<compile_context>
chip_gen: v5e
topology: v5e:2x2
jax: 0.10.0
libtpu: 0.0.40
codegen_flags: <defaults>
</compile_context>

<pallas_src>
import functools

import jax
import jax.numpy as jnp
from jax import lax
from jax.experimental import pallas as pl
from jax.experimental.pallas import tpu as pltpu


def _round_up(x, m):
    return ((x + m - 1) // m) * m


def _sublane_multiple(dtype):
    # f32: 8 rows per vreg; bf16 packs 16; int8/fp8 pack 32.
    return {4: 8, 2: 16, 1: 32}.get(jnp.dtype(dtype).itemsize, 8)


def _tpu_vmem_capacity_bytes():
    try:
        return int(pltpu.get_tpu_info().vmem_capacity_bytes)
    except Exception:
        return 64 << 20  # conservative (v7x per-core VMEM)


def _vmem_budget_bytes():
    # ~75% of physical VMEM: ~96 MiB on v5e/v6e, ~48 MiB on v7x.
    return max((_tpu_vmem_capacity_bytes() * 3) // 4, 32 << 20)


def _vmem_limit(need_bytes):
    cap = _tpu_vmem_capacity_bytes()
    # Never clamp below the computed need; stay under physical VMEM otherwise.
    return int(min(max(need_bytes, 32 << 20), max(cap - (8 << 20), need_bytes)))


_ROW_TILE = 256  # row tile used only when the full gram no longer fits in VMEM


def _select_tiling(ab, cd, dtype):
    """Choose padded shapes and (row, K) tile sizes from the VMEM budget."""
    itemsize = jnp.dtype(dtype).itemsize
    sub = _sublane_multiple(dtype)
    ab_p = _round_up(ab, sub)
    cd_128 = _round_up(cd, 128)
    budget = _vmem_budget_bytes()

    # Row tiling only when the gram-sized f32 buffers would eat the VMEM budget.
    if 3 * ab_p * ab_p * 4 <= budget // 2:
        tm = ab_p
    else:
        tm = min(ab_p, _round_up(_ROW_TILE, sub))
    n_rb = -(-ab_p // tm)
    ab_p = tm * n_rb  # make the row grid divide exactly (zero padding is exact)

    # Bytes that do not scale with tk (accumulator + double-buffered gram/target).
    fixed = 3 * tm * ab_p * 4
    # Per-K-column streaming cost (double-buffered feature tiles).
    per_col = 2 * tm * itemsize + (2 * ab_p * itemsize if n_rb > 1 else 0)
    tk_cap = max(128, ((budget - fixed) // max(per_col, 1)) // 128 * 128)
    tk_cap = min(tk_cap, cd_128, 1 << 17)

    if cd_128 <= tk_cap:
        tk = cd_128                      # single fat K step
    else:
        tk = 128
        t = tk_cap
        while t >= 128:                  # largest tk <= cap that divides cd_128
            if cd_128 % t == 0:
                tk = t
                break
            t -= 128
    cd_p = _round_up(cd_128, tk)
    return ab_p, cd_p, tm, tk, n_rb


def _prepare_features(x):
    """Flatten to (N*C, H*W) in native dtype; pad only if the tiling needs it."""
    n, c, h, w = x.shape
    ab, cd = n * c, h * w
    feat = x.reshape(ab, cd)             # no f32 pre-cast: MXU accumulates in f32
    ab_p, cd_p, tm, tk, n_rb = _select_tiling(ab, cd, x.dtype)
    if (ab_p, cd_p) != (ab, cd):
        # Zero padding contributes nothing to F @ F.T, so gram/loss stay exact.
        feat = jnp.pad(feat, ((0, ab_p - ab), (0, cd_p - cd)))
    return feat, ab, cd, ab_p, cd_p, tm, tk, n_rb


# ----------------------------- kernels -------------------------------------

def _gram_kernel(feat_ref, gram_ref, *, inv_denom):
    # feat_ref: (AB, TK); gram_ref: (AB, AB) f32, used directly as accumulator.
    k = pl.program_id(0)

    @pl.when(k == 0)
    def _():
        gram_ref[...] = jnp.zeros_like(gram_ref)

    f = feat_ref[...]
    # F @ F.T without materializing a transpose: contract the lane axis of both
    # operands directly on the MXU (f32 accumulation).
    gram_ref[...] += lax.dot_general(
        f, f,
        dimension_numbers=(((1,), (1,)), ((), ())),
        preferred_element_type=jnp.float32,
    )

    @pl.when(k == pl.num_programs(0) - 1)
    def _():
        gram_ref[...] *= inv_denom


def _gram_kernel_tiled(lhs_ref, rhs_ref, gram_ref, *, inv_denom):
    # lhs_ref: (TM, TK) row block; rhs_ref: (AB, TK); gram_ref: (TM, AB).
    k = pl.program_id(1)

    @pl.when(k == 0)
    def _():
        gram_ref[...] = jnp.zeros_like(gram_ref)

    gram_ref[...] += lax.dot_general(
        lhs_ref[...], rhs_ref[...],
        dimension_numbers=(((1,), (1,)), ((), ())),
        preferred_element_type=jnp.float32,
    )

    @pl.when(k == pl.num_programs(1) - 1)
    def _():
        gram_ref[...] *= inv_denom


def _style_loss_kernel(feat_ref, target_ref, loss_ref, acc_ref, *,
                       inv_denom, inv_numel):
    # feat_ref: (AB, TK); target_ref: (AB, AB); loss_ref: (1, 1) SMEM scalar.
    k = pl.program_id(0)

    @pl.when(k == 0)
    def _():
        acc_ref[...] = jnp.zeros_like(acc_ref)

    f = feat_ref[...]
    acc_ref[...] += lax.dot_general(
        f, f,
        dimension_numbers=(((1,), (1,)), ((), ())),
        preferred_element_type=jnp.float32,
    )

    # Finalize only on the last contraction step: scale the gram, diff against
    # the resident target, and do the cross-lane reduce once.
    @pl.when(k == pl.num_programs(0) - 1)
    def _():
        diff = acc_ref[...] * inv_denom - target_ref[...]
        loss_ref[0, 0] = jnp.sum(diff * diff) * inv_numel


def _style_loss_kernel_tiled(lhs_ref, rhs_ref, target_ref, loss_ref, acc_ref, *,
                             inv_denom, inv_numel):
    # Row-tiled variant for large N*C: accumulate the scalar loss across row
    # blocks (row axis must be sequential).
    i = pl.program_id(0)
    k = pl.program_id(1)
    last_k = pl.num_programs(1) - 1

    @pl.when(k == 0)
    def _():
        acc_ref[...] = jnp.zeros_like(acc_ref)

    acc_ref[...] += lax.dot_general(
        lhs_ref[...], rhs_ref[...],
        dimension_numbers=(((1,), (1,)), ((), ())),
        preferred_element_type=jnp.float32,
    )

    @pl.when((k == last_k) & (i == 0))
    def _():
        loss_ref[0, 0] = 0.0

    @pl.when(k == last_k)
    def _():
        diff = acc_ref[...] * inv_denom - target_ref[...]
        loss_ref[0, 0] += jnp.sum(diff * diff) * inv_numel


# ----------------------------- wrappers ------------------------------------

def gram_matrix(x):
    """G = (F @ F.T) / (N*C*H*W) with F = x.reshape(N*C, H*W)."""
    feat, ab, cd, ab_p, cd_p, tm, tk, n_rb = _prepare_features(x)
    inv_denom = 1.0 / float(ab * cd)
    itemsize = jnp.dtype(x.dtype).itemsize
    n_k = cd_p // tk

    if n_rb == 1:
        need = 2 * ab_p * tk * itemsize + 2 * ab_p * ab_p * 4 + (4 << 20)
        g = pl.pallas_call(
            functools.partial(_gram_kernel, inv_denom=inv_denom),
            out_shape=jax.ShapeDtypeStruct((ab_p, ab_p), jnp.float32),
            grid=(n_k,),
            in_specs=[pl.BlockSpec((ab_p, tk), lambda k: (0, k))],
            out_specs=pl.BlockSpec((ab_p, ab_p), lambda k: (0, 0)),
            compiler_params=pltpu.CompilerParams(
                dimension_semantics=("arbitrary",),
                vmem_limit_bytes=_vmem_limit(need),
            ),
        )(feat)
    else:
        # Row-parallel grid: each row block owns its output rows, so the row
        # axis can be split across v7x's two TensorCores.
        need = (2 * tm * tk + 2 * ab_p * tk) * itemsize + 2 * tm * ab_p * 4 + (4 << 20)
        g = pl.pallas_call(
            functools.partial(_gram_kernel_tiled, inv_denom=inv_denom),
            out_shape=jax.ShapeDtypeStruct((ab_p, ab_p), jnp.float32),
            grid=(n_rb, n_k),
            in_specs=[pl.BlockSpec((tm, tk), lambda i, k: (i, k)),
                      pl.BlockSpec((ab_p, tk), lambda i, k: (0, k))],
            out_specs=pl.BlockSpec((tm, ab_p), lambda i, k: (i, 0)),
            compiler_params=pltpu.CompilerParams(
                dimension_semantics=("parallel", "arbitrary"),
                vmem_limit_bytes=_vmem_limit(need),
            ),
        )(feat, feat)
    return g[:ab, :ab]


class StyleLoss:
    """Mirrors the PyTorch StyleLoss module: stores the target gram at init;
    forward computes MSE(gram(input), target) into self.loss and returns the
    input unchanged."""

    def __init__(self, target_feature):
        self.target = gram_matrix(target_feature)   # detached by construction
        self.loss = jnp.float32(0.0)
        self._padded_target_cache = {}

    def _padded_target(self, ab_p):
        # Padded rows/cols of both G and target are zero, so they do not affect
        # the sum of squares. Cached so repeated forward() calls in an
        # optimization loop do not re-pad.
        t = self._padded_target_cache.get(ab_p)
        if t is None:
            ab = self.target.shape[0]
            t = jnp.pad(self.target, ((0, ab_p - ab), (0, ab_p - ab)))
            self._padded_target_cache[ab_p] = t
        return t

    def forward(self, x):
        feat, ab, cd, ab_p, cd_p, tm, tk, n_rb = _prepare_features(x)
        target_p = self._padded_target(ab_p)
        inv_denom = 1.0 / float(ab * cd)
        inv_numel = 1.0 / float(ab * ab)   # mse mean over the true (ab, ab) gram
        itemsize = jnp.dtype(x.dtype).itemsize
        n_k = cd_p // tk

        if n_rb == 1:
            # Note: the resident target is only read on the last K step; with
            # pipeline_mode=pl.Buffered(1) its second buffer could be reclaimed,
            # but the f32 gram buffers are small next to the feature tiles.
            need = 2 * ab_p * tk * itemsize + 3 * ab_p * ab_p * 4 + (4 << 20)
            loss = pl.pallas_call(
                functools.partial(
                    _style_loss_kernel, inv_denom=inv_denom, inv_numel=inv_numel),
                out_shape=jax.ShapeDtypeStruct((1, 1), jnp.float32),
                grid=(n_k,),
                in_specs=[
                    pl.BlockSpec((ab_p, tk), lambda k: (0, k)),
                    pl.BlockSpec((ab_p, ab_p), lambda k: (0, 0)),
                ],
                out_specs=pl.BlockSpec(memory_space=pltpu.MemorySpace.SMEM),
                scratch_shapes=[pltpu.VMEM((ab_p, ab_p), jnp.float32)],
                compiler_params=pltpu.CompilerParams(
                    dimension_semantics=("arbitrary",),
                    vmem_limit_bytes=_vmem_limit(need),
                ),
            )(feat, target_p)
        else:
            need = (2 * tm * tk + 2 * ab_p * tk) * itemsize + 3 * tm * ab_p * 4 + (4 << 20)
            loss = pl.pallas_call(
                functools.partial(
                    _style_loss_kernel_tiled, inv_denom=inv_denom, inv_numel=inv_numel),
                out_shape=jax.ShapeDtypeStruct((1, 1), jnp.float32),
                grid=(n_rb, n_k),
                in_specs=[
                    pl.BlockSpec((tm, tk), lambda i, k: (i, k)),
                    pl.BlockSpec((ab_p, tk), lambda i, k: (0, k)),
                    pl.BlockSpec((tm, ab_p), lambda i, k: (i, 0)),
                ],
                out_specs=pl.BlockSpec(memory_space=pltpu.MemorySpace.SMEM),
                scratch_shapes=[pltpu.VMEM((tm, ab_p), jnp.float32)],
                compiler_params=pltpu.CompilerParams(
                    # Row axis stays sequential: the SMEM scalar loss is
                    # accumulated across row blocks.
                    dimension_semantics=("arbitrary", "arbitrary"),
                    vmem_limit_bytes=_vmem_limit(need),
                ),
            )(feat, feat, target_p)
        self.loss = loss[0, 0]
        return x


# ------------------------------- main ---------------------------------------

if __name__ == "__main__":
    key = jax.random.PRNGKey(0)
    k_tgt, k_in = jax.random.split(key)

    # Small shapes consistent with a conv feature map: N=2, C=4, H=W=16.
    target_feature = jax.random.normal(k_tgt, (2, 4, 16, 16), dtype=jnp.float32)
    x = jax.random.normal(k_in, (2, 4, 16, 16), dtype=jnp.float32)

    module = StyleLoss(target_feature)
    out = module.forward(x)

    out = jax.block_until_ready(out)
    loss = jax.block_until_ready(module.loss)

    # Lightweight reference check in plain JAX.
    def _ref_gram(t):
        n, c, h, w = t.shape
        f = t.reshape(n * c, h * w)
        return (f @ f.T) / (n * c * h * w)

    g_ref = _ref_gram(x)
    t_ref = _ref_gram(target_feature)
    loss_ref = jnp.mean((g_ref - t_ref) ** 2)

    assert out.shape == x.shape
    assert jnp.allclose(out, x)
    assert jnp.allclose(module.target, t_ref, rtol=1e-5, atol=1e-6)
    assert jnp.allclose(loss, loss_ref, rtol=1e-5, atol=1e-6)

    print("KERNEL_OK")
</pallas_src>

<mosaic_0001>
module attributes {stable_mosaic.version = 11 : i64} {
  func.func @_gram_kernel(%arg0: i32, %arg1: memref<8x256xf32, #tpu.memory_space<vmem>>, %arg2: memref<8x8xf32, #tpu.memory_space<vmem>>) attributes {dimension_semantics = [#tpu.dimension_semantics<arbitrary>], iteration_bounds = array<i64: 1>, scalar_prefetch = 0 : i64, scratch_operands = 0 : i64, tpu.core_type = #tpu.core_type<tc>, window_params = [{transform_indices = @transform_0, window_bounds = array<i64: 8, 256>}, {pipeline_mode = #tpu.pipeline_mode<synchronous>, transform_indices = @transform_1, window_bounds = array<i64: 8, 8>}]} {
    %c0_i32 = arith.constant 0 : i32
    %0 = arith.cmpi eq, %arg0, %c0_i32 : i32
    %1 = arith.extui %0 : i1 to i32
    %c0_i32_0 = arith.constant 0 : i32
    %2 = arith.cmpi ne, %1, %c0_i32_0 : i32
    scf.if %2 {
      %cst_8 = arith.constant 0.000000e+00 : f32
      %11 = vector.broadcast %cst_8 : f32 to vector<8x8xf32>
      %c0_9 = arith.constant 0 : index
      %c0_10 = arith.constant 0 : index
      %12 = vector.load %arg2[%c0_9, %c0_10] : memref<8x8xf32, #tpu.memory_space<vmem>>, vector<8x8xf32>
      tpu.vector_store %arg2[%c0_9, %c0_10], %11 {strides = array<i32>} : memref<8x8xf32, #tpu.memory_space<vmem>>, vector<8x8xf32>,
    } else {
    }
    %c0 = arith.constant 0 : index
    %c0_1 = arith.constant 0 : index
    %3 = vector.load %arg1[%c0, %c0_1] : memref<8x256xf32, #tpu.memory_space<vmem>>, vector<8x256xf32>
    %c0_2 = arith.constant 0 : index
    %c0_3 = arith.constant 0 : index
    %4 = vector.load %arg2[%c0_2, %c0_3] : memref<8x8xf32, #tpu.memory_space<vmem>>, vector<8x8xf32>
    %cst = arith.constant dense<0.000000e+00> : vector<8x8xf32>
    %5 = tpu.matmul %3, %3, %cst {dimension_numbers = #tpu.dot_dimension_numbers<[1], [1], [0], [0], [0, 0, 1, 0], [], []>} : vector<8x256xf32>, vector<8x256xf32>, vector<8x8xf32> -> vector<8x8xf32>
    %6 = arith.addf %4, %5 : vector<8x8xf32>
    %c0_4 = arith.constant 0 : index
    %c0_5 = arith.constant 0 : index
    %7 = vector.load %arg2[%c0_4, %c0_5] : memref<8x8xf32, #tpu.memory_space<vmem>>, vector<8x8xf32>
    tpu.vector_store %arg2[%c0_4, %c0_5], %6 {strides = array<i32>} : memref<8x8xf32, #tpu.memory_space<vmem>>, vector<8x8xf32>,
    %c0_i32_6 = arith.constant 0 : i32
    %8 = arith.cmpi eq, %arg0, %c0_i32_6 : i32
    %9 = arith.extui %8 : i1 to i32
    %c0_i32_7 = arith.constant 0 : i32
    %10 = arith.cmpi ne, %9, %c0_i32_7 : i32
    scf.if %10 {
      %c0_8 = arith.constant 0 : index
      %c0_9 = arith.constant 0 : index
      %11 = vector.load %arg2[%c0_8, %c0_9] : memref<8x8xf32, #tpu.memory_space<vmem>>, vector<8x8xf32>
      %cst_10 = arith.constant 4.8828125E-4 : f32
      %12 = vector.broadcast %cst_10 : f32 to vector<8x8xf32>
      %13 = arith.mulf %11, %12 : vector<8x8xf32>
      %c0_11 = arith.constant 0 : index
      %c0_12 = arith.constant 0 : index
      %14 = vector.load %arg2[%c0_11, %c0_12] : memref<8x8xf32, #tpu.memory_space<vmem>>, vector<8x8xf32>
      tpu.vector_store %arg2[%c0_11, %c0_12], %13 {strides = array<i32>} : memref<8x8xf32, #tpu.memory_space<vmem>>, vector<8x8xf32>,
    } else {
    }
    return
  }
  func.func @transform_0(%arg0: i32) -> (i32, i32) {
    %c0_i32 = arith.constant 0 : i32
    %c0_i32_0 = arith.constant 0 : i32
    return %c0_i32, %arg0 : i32, i32
  }
  func.func @transform_1(%arg0: i32) -> (i32, i32) {
    %c0_i32 = arith.constant 0 : i32
    %c0_i32_0 = arith.constant 0 : i32
    %c0_i32_1 = arith.constant 0 : i32
    return %c0_i32, %c0_i32_0 : i32, i32
  }
}

</mosaic_0001>

<llo_original>
// kernel: tpu_custom_call.1
$region0: #{tpu_custom_call.1}
  #allocation0 [shape = 'u32[]', space=smem, size = 0x4, offset = 0x4, fixed_abs, tag = 'smem constant byte address 0x4 - core index']
  #allocation1 [shape = 'u32[72,128]{1,0:T(1,128)}', space=vmem, size = 0x9000, scoped, tag = 'internal scratch']
  %s0 = inlined_call_operand.hbm [shape: f32[8,256], index: 0, kind: input, shape index: {}]
  %s1 = inlined_call_operand.hbm [shape: f32[8,8], index: 1, kind: output, shape index: {}]
  %s2 = sld [smem:[#allocation0]]
  $region26: #{tpu_custom_call.1} parent=0
    _
  %s4 = ssub.s32 1, %s2
  %s5 = scalar_select 0, %s4, %s2
  $region1: #{tpu_custom_call.1} parent=0
    #allocation2 [shape = 'u8[8192]{0}', space=vmem, size = 0x2000, scoped, tag = 'input window, operand 0, single buffered']
    #allocation3 [shape = 's32[1]{0}', space=sflag, size = 0x4, scoped, tag = 'scoped memory for tpu_custom_call.1']
    #allocation4 [shape = 's32[1]{0}', space=sflag, size = 0x4, scoped, tag = 'scoped memory for tpu_custom_call.1']
    #allocation5 [shape = 'u8[4096]{0}', space=vmem, size = 0x1000, scoped, tag = 'output window, operand 0, single buffered']
    %6 = vsyncpa [#allocation3], 0
    %7 = vsyncpa [#allocation4], 0
    // Predicated region
    $region2: #{tpu_custom_call.1} parent=1 // pred_check
      _
    $region3: #{tpu_custom_call.1} parent=1 // pred_check_branch
      %9 = sbr.rel (0) target = $region5
    $region4: #{tpu_custom_call.1} parent=1 // pred_region
      %11 = vsyncadd [#allocation3], 0
      %s13 = sshll.u32 %s0, 4
      %s14 = int_to_ptr.hbm [resolvable:$true] %s13
      %s15 = sshll.u32 [#allocation2], 4
      %s16 = int_to_ptr.vmem [resolvable:$true] %s15
      %18 = dma.hbm_to_vmem [thread:$0]  %s14, 256, %s16, [#allocation3]
    $region5: #{tpu_custom_call.1} parent=1 // pred_fallthru
      _
    // Predicated region
    $region6: #{tpu_custom_call.1} parent=1 // pred_check
      _
    $region7: #{tpu_custom_call.1} parent=1 // pred_check_branch
      %20 = sbr.rel (0) target = $region9
    $region8: #{tpu_custom_call.1} parent=1 // pred_region
      %22 = dma.done [#allocation3], 256
    $region9: #{tpu_custom_call.1} parent=1 // pred_fallthru
      _
    %p23 = scmp.eq.s32.totalorder 0, 0
    // Predicated region
    $region10: #{tpu_custom_call.1} parent=1 // pred_check
      %p24 = pneg %p23
    $region11: #{tpu_custom_call.1} parent=1 // pred_check_branch
      %26 = sbr.rel (%p24) target = $region13
    $region12: #{tpu_custom_call.1} parent=1 // pred_region
      %vm27 = vcmask 64512
      %28 = vst.msk [vmem:[#allocation5] sm:$0xff] %vm27, 0.0
    $region13: #{tpu_custom_call.1} parent=1 // pred_fallthru
      _
    %v29 = vld [vmem:[#allocation2] sm:$0xff]
    %v30 = vld [vmem:[#allocation2 + $0x8] sm:$0xff]
    %v31 = vld [vmem:[#allocation5] sm:$0xff]
    %32 = vmatpush.xpose.msra.mxu0 0.0
    %33 = vmatpush.xpose.msra.mxu0 0.0
    %34 = vmatpush.xpose.msra.mxu0 0.0
    %35 = vmatpush.xpose.msra.mxu0 0.0
    %36 = vmatpush.xpose.msra.mxu0 0.0
    %37 = vmatpush.xpose.msra.mxu0 0.0
    %38 = vmatpush.xpose.msra.mxu0 0.0
    %39 = vmatpush.xpose.msra.mxu0 0.0
    %40 = vmatpush.xpose.msra.mxu0 0.0
    %41 = vmatpush.xpose.msra.mxu0 0.0
    %42 = vmatpush.xpose.msra.mxu0 0.0
    %43 = vmatpush.xpose.msra.mxu0 0.0
    %44 = vmatpush.xpose.msra.mxu0 0.0
    %45 = vmatpush.xpose.msra.mxu0 0.0
    %46 = vmatpush.xpose.msra.mxu0 0.0
    %47 = vmatpush.xpose.msra.mxu0 %v29
    %48 = vmatmul.f32.gmra.mxu0 %v29
    %v49 = vpop.f32.mrf.mxu0
    %v50 = vadd.f32 0.0, %v49
    %51 = vdwg.mxu0
    %52 = vmatpush.xpose.msra.mxu0 0.0
    %53 = vmatpush.xpose.msra.mxu0 0.0
    %54 = vmatpush.xpose.msra.mxu0 0.0
    %55 = vmatpush.xpose.msra.mxu0 0.0
    %56 = vmatpush.xpose.msra.mxu0 0.0
    %57 = vmatpush.xpose.msra.mxu0 0.0
    %58 = vmatpush.xpose.msra.mxu0 0.0
    %59 = vmatpush.xpose.msra.mxu0 0.0
    %60 = vmatpush.xpose.msra.mxu0 0.0
    %61 = vmatpush.xpose.msra.mxu0 0.0
    %62 = vmatpush.xpose.msra.mxu0 0.0
    %63 = vmatpush.xpose.msra.mxu0 0.0
    %64 = vmatpush.xpose.msra.mxu0 0.0
    %65 = vmatpush.xpose.msra.mxu0 0.0
    %66 = vmatpush.xpose.msra.mxu0 0.0
    %67 = vmatpush.xpose.msra.mxu0 %v30
    %68 = vmatmul.f32.gmra.mxu0 %v30
    %v69 = vpop.f32.mrf.mxu0
    %v70 = vadd.f32 %v50, %v69
    %71 = vdwg.mxu0
    %v72 = vadd.f32 %v31, %v70
    %vm73 = vcmask 64512
    %74 = vst.msk [vmem:[#allocation5] sm:$0xff] %vm73, %v72
    // Predicated region
    $region14: #{tpu_custom_call.1} parent=1 // pred_check
      %p75 = pneg %p23
    $region15: #{tpu_custom_call.1} parent=1 // pred_check_branch
      %77 = sbr.rel (%p75) target = $region17
    $region16: #{tpu_custom_call.1} parent=1 // pred_region
      %v78 = vld [vmem:[#allocation5] sm:$0xff]
      %v79 = vmul.f32 %v78, 0.00048828125
      %80 = vst.msk [vmem:[#allocation5] sm:$0xff] %vm73, %v79
    $region17: #{tpu_custom_call.1} parent=1 // pred_fallthru
      _
    // Predicated region
    $region18: #{tpu_custom_call.1} parent=1 // pred_check
      _
    $region19: #{tpu_custom_call.1} parent=1 // pred_check_branch
      %82 = sbr.rel (0) target = $region21
    $region20: #{tpu_custom_call.1} parent=1 // pred_region
      %84 = vsyncadd [#allocation4], 0
      %s86 = sshll.u32 [#allocation5], 4
      %s87 = int_to_ptr.vmem [resolvable:$true] %s86
      %s88 = sshll.u32 %s1, 4
      %s89 = int_to_ptr.hbm [resolvable:$true] %s88
      %91 = dma.vmem_to_hbm [thread:$0]  %s87, 128, %s89, [#allocation4]
    $region21: #{tpu_custom_call.1} parent=1 // pred_fallthru
      _
    // Predicated region
    $region22: #{tpu_custom_call.1} parent=1 // pred_check
      _
    $region23: #{tpu_custom_call.1} parent=1 // pred_check_branch
      %93 = sbr.rel (0) target = $region25
    $region24: #{tpu_custom_call.1} parent=1 // pred_region
      %95 = dma.done [#allocation4], 128
    $region25: #{tpu_custom_call.1} parent=1 // pred_fallthru
      _
    %96 = vsyncpa [#allocation3], 1
    %97 = vsyncpa [#allocation4], 1

</llo_original>
